<compile_context>
chip_gen: v7x
topology: tpu7x:2x2x1
jax: 0.10.0
libtpu: 0.0.40
codegen_flags: <defaults>
</compile_context>

<pallas_src>
import jax
import jax.numpy as jnp
from jax.experimental import pallas as pl
from jax.experimental.pallas import tpu as pltpu

# Column layout of the folded table / selection matrix.
N_GENDER, N_ACCENT, N_STYLE = 3, 10, 20
COL_ACCENT = N_GENDER                   # 3
COL_STYLE = COL_ACCENT + N_ACCENT       # 13
COL_TEMPO = COL_STYLE + N_STYLE         # 33
COL_PITCH = COL_TEMPO + 1               # 34
COL_DUR = COL_PITCH + 1                 # 35
COL_BIAS = COL_DUR + 1                  # 36  (sel column fixed at 1.0)
K_TOTAL = COL_BIAS + 1                  # 37
K_PAD = 40                              # pad sublane dim to a multiple of 8


def _round_up(x, m):
    return (x + m - 1) // m * m


def _encoder_kernel(attrs_ref, table_ref, out_ref):
    """out[tile] = select(attrs) @ folded_table   (bias is table row COL_BIAS).

    attrs_ref : [TM, 8]       f32 (gender, accent, style, tempo, pitch, dur, 0, 0)
    table_ref : [K_PAD, H_pad] f32 folded table+bias (resident across the grid)
    out_ref   : [TM, H_pad]   out_dtype
    """
    attrs = attrs_ref[...]                                    # [TM, 8]
    tm = attrs.shape[0]

    # Clamped categorical indices (matches the reference gather's clamping).
    gidx = jnp.clip(attrs[:, 0:1].astype(jnp.int32), 0, N_GENDER - 1)
    aidx = jnp.clip(attrs[:, 1:2].astype(jnp.int32), 0, N_ACCENT - 1) + COL_ACCENT
    sidx = jnp.clip(attrs[:, 2:3].astype(jnp.int32), 0, N_STYLE - 1) + COL_STYLE

    cols = jax.lax.broadcasted_iota(jnp.int32, (tm, K_PAD), 1)
    one = jnp.float32(1.0)
    zero = jnp.float32(0.0)

    # Single fused where-chain: one-hot selections, raw continuous values and
    # the constant bias column accumulated into ONE [TM, K_PAD] array.
    sel = jnp.where(cols == gidx, one,
          jnp.where(cols == aidx, one,
          jnp.where(cols == sidx, one,
          jnp.where(cols == COL_TEMPO, attrs[:, 3:4],
          jnp.where(cols == COL_PITCH, attrs[:, 4:5],
          jnp.where(cols == COL_DUR, attrs[:, 5:6],
          jnp.where(cols == COL_BIAS, one, zero)))))))          # [TM, K_PAD]

    # Single K=40 MXU pass per tile; cast only at the store (f32 accumulation).
    out_ref[...] = jnp.dot(sel, table_ref[...],
                           preferred_element_type=jnp.float32).astype(out_ref.dtype)


def init_params(key, hidden_size):
    ks = jax.random.split(key, 11)
    scale = 0.02
    return {
        "gender_emb": scale * jax.random.normal(ks[0], (3, 64), jnp.float32),
        "accent_emb": scale * jax.random.normal(ks[1], (10, 64), jnp.float32),
        "style_emb": scale * jax.random.normal(ks[2], (20, 128), jnp.float32),
        # Linear weights stored as [in_features, out_features] (transposed vs torch).
        "w_tempo": scale * jax.random.normal(ks[3], (1, 64), jnp.float32),
        "b_tempo": scale * jax.random.normal(ks[4], (1, 64), jnp.float32),
        "w_pitch": scale * jax.random.normal(ks[5], (1, 64), jnp.float32),
        "b_pitch": scale * jax.random.normal(ks[6], (1, 64), jnp.float32),
        "w_dur": scale * jax.random.normal(ks[7], (1, 64), jnp.float32),
        "b_dur": scale * jax.random.normal(ks[8], (1, 64), jnp.float32),
        "w_proj": scale * jax.random.normal(ks[9], (448, hidden_size), jnp.float32),
        "b_proj": scale * jax.random.normal(ks[10], (1, hidden_size), jnp.float32),
    }


def fold_params(params, hidden_pad=None):
    """Fold embeddings + Linear(1,64) layers + ALL biases into one table.

    Returns a [K_PAD, hidden_pad] f32 table whose row COL_BIAS is the fused
    bias; hidden dim is zero-padded to a multiple of 128 (lane-dense stores).
    Do this ONCE offline and reuse every step.
    """
    hi = jax.lax.Precision.HIGHEST
    wp = params["w_proj"]                                          # [448, H]
    H = wp.shape[1]
    if hidden_pad is None:
        hidden_pad = _round_up(H, 128)
    gf = jnp.dot(params["gender_emb"], wp[0:64], precision=hi)     # [3,  H]
    af = jnp.dot(params["accent_emb"], wp[64:128], precision=hi)   # [10, H]
    sf = jnp.dot(params["style_emb"], wp[128:256], precision=hi)   # [20, H]
    vt = jnp.dot(params["w_tempo"], wp[256:320], precision=hi)     # [1,  H]
    vp = jnp.dot(params["w_pitch"], wp[320:384], precision=hi)     # [1,  H]
    vd = jnp.dot(params["w_dur"], wp[384:448], precision=hi)       # [1,  H]
    bias = (jnp.dot(params["b_tempo"], wp[256:320], precision=hi)
            + jnp.dot(params["b_pitch"], wp[320:384], precision=hi)
            + jnp.dot(params["b_dur"], wp[384:448], precision=hi)
            + params["b_proj"])                                    # [1,  H]
    row_pad = jnp.zeros((K_PAD - K_TOTAL, H), jnp.float32)
    table = jnp.concatenate([gf, af, sf, vt, vp, vd, bias, row_pad], axis=0)
    if hidden_pad != H:
        table = jnp.pad(table, ((0, 0), (0, hidden_pad - H)))
    return table                                                   # [K_PAD, H_pad]


def music_attributes_encoder(params, attributes, *, block_b=1024,
                             out_dtype=jnp.float32, folded=None):
    """Pallas-backed forward. Returns [B, 1, hidden_size] like the torch module."""
    H = params["w_proj"].shape[1]
    H_pad = _round_up(H, 128)
    if folded is None:
        folded = fold_params(params, hidden_pad=H_pad)   # fold once, reuse every step
    table = folded

    # Pack the six per-sample attributes into a single [B, 8] f32 array.
    gender = attributes["gender"].astype(jnp.float32).reshape(-1)
    accent = attributes["accent"].astype(jnp.float32).reshape(-1)
    style = attributes["style"].astype(jnp.float32).reshape(-1)
    tempo = attributes["tempo"].astype(jnp.float32).reshape(-1)
    pitch = attributes["pitch"].astype(jnp.float32).reshape(-1)
    duration = attributes["duration"].astype(jnp.float32).reshape(-1)
    B = gender.shape[0]
    zeros = jnp.zeros((B,), jnp.float32)
    attrs = jnp.stack(
        [gender, accent, style, tempo, pitch, duration, zeros, zeros], axis=1)

    # Pad the batch only to a multiple of 8 (NOT to a multiple of TM).
    b8 = _round_up(B, 8)
    if b8 != B:
        attrs = jnp.pad(attrs, ((0, b8 - B), (0, 0)))

    # Adaptive batch tile under a conservative VMEM budget:
    #   2 * TM * H_pad * out_bytes   (double-buffered output)
    # + 2 * TM * 8 * 4               (double-buffered packed attrs)
    # + 2 * K_PAD * H_pad * 4        (table, worst case double-buffered)
    # kept <= 12 MiB -> fits v5e's 16 MiB scoped default, v6e/v7x's 32 MiB.
    out_bytes = jnp.dtype(out_dtype).itemsize
    budget = 12 * 1024 * 1024
    table_bytes = 2 * K_PAD * H_pad * 4
    per_row = 2 * (H_pad * out_bytes + 8 * 4)
    tm_budget = max(8, ((budget - table_bytes) // per_row) // 8 * 8)
    block_b = max(8, (block_b // 8) * 8)
    tm = min(block_b, b8, tm_budget)
    # v7x has 2 TensorCores: for large batches guarantee >= 2 grid steps so the
    # "parallel" grid axis actually shards across both cores.
    if b8 >= 256:
        tm = min(tm, _round_up(pl.cdiv(b8, 2), 8))
    tm = max(8, tm)
    grid = pl.cdiv(b8, tm)        # ragged last tile allowed; padded rows sliced off

    out = pl.pallas_call(
        _encoder_kernel,
        out_shape=jax.ShapeDtypeStruct((b8, H_pad), out_dtype),
        grid_spec=pltpu.PrefetchScalarGridSpec(
            num_scalar_prefetch=0,
            grid=(grid,),
            in_specs=[
                pl.BlockSpec((tm, 8), lambda i: (i, 0)),          # packed attrs (tiled)
                pl.BlockSpec((K_PAD, H_pad), lambda i: (0, 0)),   # folded table (resident)
            ],
            out_specs=pl.BlockSpec((tm, H_pad), lambda i: (i, 0)),
        ),
        compiler_params=pltpu.CompilerParams(
            dimension_semantics=("parallel",)),
    )(attrs, table)

    return out[:B, :H][:, None, :]          # == .unsqueeze(1), drop lane padding


def _reference(params, attributes):
    """Pure-JAX reference with the original (unfolded) module semantics."""
    hi = jax.lax.Precision.HIGHEST
    g = params["gender_emb"][attributes["gender"].astype(jnp.int32)]
    a = params["accent_emb"][attributes["accent"].astype(jnp.int32)]
    s = params["style_emb"][attributes["style"].astype(jnp.int32)]
    tempo = attributes["tempo"].astype(jnp.float32).reshape(-1, 1)
    pitch = attributes["pitch"].astype(jnp.float32).reshape(-1, 1)
    dur = attributes["duration"].astype(jnp.float32).reshape(-1, 1)
    t = tempo * params["w_tempo"] + params["b_tempo"]        # Linear(1,64)
    p = pitch * params["w_pitch"] + params["b_pitch"]
    d = dur * params["w_dur"] + params["b_dur"]
    combined = jnp.concatenate([g, a, s, t, p, d], axis=1)   # [B, 448]
    out = jnp.dot(combined, params["w_proj"], precision=hi) + params["b_proj"]
    return out[:, None, :]


def _make_attrs(key, B):
    ks = jax.random.split(key, 6)
    return {
        "gender": jax.random.randint(ks[0], (B,), 0, 3),
        "accent": jax.random.randint(ks[1], (B,), 0, 10),
        "style": jax.random.randint(ks[2], (B,), 0, 20),
        "tempo": jax.random.normal(ks[3], (B, 1), jnp.float32),
        "pitch": jax.random.normal(ks[4], (B, 1), jnp.float32),
        "duration": jax.random.normal(ks[5], (B, 1), jnp.float32),
    }


if __name__ == "__main__":
    key = jax.random.PRNGKey(0)
    pkey, dkey1, dkey2 = jax.random.split(key, 3)

    # Case 1: small batch with padding 12 -> 16, H already lane-dense (128).
    B, H = 12, 128
    params = init_params(pkey, H)
    attributes = _make_attrs(dkey1, B)
    out = jax.block_until_ready(music_attributes_encoder(params, attributes))
    assert out.shape == (B, 1, H), out.shape
    ref = _reference(params, attributes)
    # Kernel matmul runs at default MXU precision (bf16 passes) vs HIGHEST in
    # the reference; tolerance documents that gap at these weight scales.
    err = float(jnp.max(jnp.abs(out - ref)))
    assert jnp.allclose(out, ref, atol=5e-4, rtol=2e-3), err

    # Case 2: multi-step grid + hidden padding (H=192 -> 256 lanes, 3 tiles of 8).
    B2, H2 = 24, 192
    params2 = init_params(pkey, H2)
    attributes2 = _make_attrs(dkey2, B2)
    out2 = jax.block_until_ready(
        music_attributes_encoder(params2, attributes2, block_b=8))
    assert out2.shape == (B2, 1, H2), out2.shape
    ref2 = _reference(params2, attributes2)
    err2 = float(jnp.max(jnp.abs(out2 - ref2)))
    assert jnp.allclose(out2, ref2, atol=5e-4, rtol=2e-3), err2

    print("KERNEL_OK")
</pallas_src>

<mosaic_0001>
module attributes {stable_mosaic.version = 11 : i64} {
  func.func @_encoder_kernel(%arg0: i32, %arg1: memref<16x8xf32, #tpu.memory_space<vmem>>, %arg2: memref<40x128xf32, #tpu.memory_space<vmem>>, %arg3: memref<16x128xf32, #tpu.memory_space<vmem>>) attributes {dimension_semantics = [#tpu.dimension_semantics<parallel>], iteration_bounds = array<i64: 1>, scalar_prefetch = 0 : i64, scratch_operands = 0 : i64, tpu.core_type = #tpu.core_type<tc>, window_params = [{transform_indices = @transform_0, window_bounds = array<i64: 16, 8>}, {pipeline_mode = #tpu.pipeline_mode<synchronous>, transform_indices = @transform_1, window_bounds = array<i64: 40, 128>}, {transform_indices = @transform_2, window_bounds = array<i64: 16, 128>}]} {
    %c0 = arith.constant 0 : index
    %c0_0 = arith.constant 0 : index
    %0 = vector.load %arg1[%c0, %c0_0] : memref<16x8xf32, #tpu.memory_space<vmem>>, vector<16x8xf32>
    %1 = vector.extract_strided_slice %0 {offsets = [0, 0], sizes = [16, 1], strides = [1, 1]} : vector<16x8xf32> to vector<16x1xf32>
    %2 = arith.fptosi %1 : vector<16x1xf32> to vector<16x1xi32>
    %c0_i32 = arith.constant 0 : i32
    %c2_i32 = arith.constant 2 : i32
    %3 = vector.broadcast %c0_i32 : i32 to vector<16x1xi32>
    %4 = arith.maxsi %3, %2 : vector<16x1xi32>
    %5 = vector.broadcast %c2_i32 : i32 to vector<16x1xi32>
    %6 = arith.minsi %5, %4 : vector<16x1xi32>
    %7 = vector.extract_strided_slice %0 {offsets = [0, 1], sizes = [16, 1], strides = [1, 1]} : vector<16x8xf32> to vector<16x1xf32>
    %8 = arith.fptosi %7 : vector<16x1xf32> to vector<16x1xi32>
    %c0_i32_1 = arith.constant 0 : i32
    %c9_i32 = arith.constant 9 : i32
    %9 = vector.broadcast %c0_i32_1 : i32 to vector<16x1xi32>
    %10 = arith.maxsi %9, %8 : vector<16x1xi32>
    %11 = vector.broadcast %c9_i32 : i32 to vector<16x1xi32>
    %12 = arith.minsi %11, %10 : vector<16x1xi32>
    %c3_i32 = arith.constant 3 : i32
    %13 = vector.broadcast %c3_i32 : i32 to vector<16x1xi32>
    %14 = arith.addi %12, %13 : vector<16x1xi32>
    %15 = vector.extract_strided_slice %0 {offsets = [0, 2], sizes = [16, 1], strides = [1, 1]} : vector<16x8xf32> to vector<16x1xf32>
    %16 = arith.fptosi %15 : vector<16x1xf32> to vector<16x1xi32>
    %c0_i32_2 = arith.constant 0 : i32
    %c19_i32 = arith.constant 19 : i32
    %17 = vector.broadcast %c0_i32_2 : i32 to vector<16x1xi32>
    %18 = arith.maxsi %17, %16 : vector<16x1xi32>
    %19 = vector.broadcast %c19_i32 : i32 to vector<16x1xi32>
    %20 = arith.minsi %19, %18 : vector<16x1xi32>
    %c13_i32 = arith.constant 13 : i32
    %21 = vector.broadcast %c13_i32 : i32 to vector<16x1xi32>
    %22 = arith.addi %20, %21 : vector<16x1xi32>
    %23 = tpu.iota {dimensions = array<i32: 1>} : vector<16x40xi32>
    %24 = vector.broadcast %6 : vector<16x1xi32> to vector<16x40xi32>
    %25 = arith.cmpi eq, %23, %24 : vector<16x40xi32>
    %26 = vector.broadcast %14 : vector<16x1xi32> to vector<16x40xi32>
    %27 = arith.cmpi eq, %23, %26 : vector<16x40xi32>
    %28 = vector.broadcast %22 : vector<16x1xi32> to vector<16x40xi32>
    %29 = arith.cmpi eq, %23, %28 : vector<16x40xi32>
    %c33_i32 = arith.constant 33 : i32
    %30 = vector.broadcast %c33_i32 : i32 to vector<16x40xi32>
    %31 = arith.cmpi eq, %23, %30 : vector<16x40xi32>
    %32 = vector.extract_strided_slice %0 {offsets = [0, 3], sizes = [16, 1], strides = [1, 1]} : vector<16x8xf32> to vector<16x1xf32>
    %c34_i32 = arith.constant 34 : i32
    %33 = vector.broadcast %c34_i32 : i32 to vector<16x40xi32>
    %34 = arith.cmpi eq, %23, %33 : vector<16x40xi32>
    %35 = vector.extract_strided_slice %0 {offsets = [0, 4], sizes = [16, 1], strides = [1, 1]} : vector<16x8xf32> to vector<16x1xf32>
    %c35_i32 = arith.constant 35 : i32
    %36 = vector.broadcast %c35_i32 : i32 to vector<16x40xi32>
    %37 = arith.cmpi eq, %23, %36 : vector<16x40xi32>
    %38 = vector.extract_strided_slice %0 {offsets = [0, 5], sizes = [16, 1], strides = [1, 1]} : vector<16x8xf32> to vector<16x1xf32>
    %c36_i32 = arith.constant 36 : i32
    %39 = vector.broadcast %c36_i32 : i32 to vector<16x40xi32>
    %40 = arith.cmpi eq, %23, %39 : vector<16x40xi32>
    %cst = arith.constant 1.000000e+00 : f32
    %cst_3 = arith.constant 0.000000e+00 : f32
    %41 = vector.broadcast %cst : f32 to vector<16x40xf32>
    %42 = vector.broadcast %cst_3 : f32 to vector<16x40xf32>
    %43 = arith.select %40, %41, %42 : vector<16x40xi1>, vector<16x40xf32>
    %44 = vector.shape_cast %38 : vector<16x1xf32> to vector<16x1xf32>
    %45 = vector.broadcast %44 : vector<16x1xf32> to vector<16x40xf32>
    %46 = arith.select %37, %45, %43 : vector<16x40xi1>, vector<16x40xf32>
    %47 = vector.shape_cast %35 : vector<16x1xf32> to vector<16x1xf32>
    %48 = vector.broadcast %47 : vector<16x1xf32> to vector<16x40xf32>
    %49 = arith.select %34, %48, %46 : vector<16x40xi1>, vector<16x40xf32>
    %50 = vector.shape_cast %32 : vector<16x1xf32> to vector<16x1xf32>
    %51 = vector.broadcast %50 : vector<16x1xf32> to vector<16x40xf32>
    %52 = arith.select %31, %51, %49 : vector<16x40xi1>, vector<16x40xf32>
    %cst_4 = arith.constant 1.000000e+00 : f32
    %53 = vector.broadcast %cst_4 : f32 to vector<16x40xf32>
    %54 = arith.select %29, %53, %52 : vector<16x40xi1>, vector<16x40xf32>
    %cst_5 = arith.constant 1.000000e+00 : f32
    %55 = vector.broadcast %cst_5 : f32 to vector<16x40xf32>
    %56 = arith.select %27, %55, %54 : vector<16x40xi1>, vector<16x40xf32>
    %cst_6 = arith.constant 1.000000e+00 : f32
    %57 = vector.broadcast %cst_6 : f32 to vector<16x40xf32>
    %58 = arith.select %25, %57, %56 : vector<16x40xi1>, vector<16x40xf32>
    %c0_7 = arith.constant 0 : index
    %c0_8 = arith.constant 0 : index
    %59 = vector.load %arg2[%c0_7, %c0_8] : memref<40x128xf32, #tpu.memory_space<vmem>>, vector<40x128xf32>
    %cst_9 = arith.constant dense<0.000000e+00> : vector<16x128xf32>
    %60 = tpu.matmul %58, %59, %cst_9 {dimension_numbers = #tpu.dot_dimension_numbers<[1], [0], [0], [1], [0, 0, 1, 1], [], []>} : vector<16x40xf32>, vector<40x128xf32>, vector<16x128xf32> -> vector<16x128xf32>
    %c0_10 = arith.constant 0 : index
    %c0_11 = arith.constant 0 : index
    %61 = vector.load %arg3[%c0_10, %c0_11] : memref<16x128xf32, #tpu.memory_space<vmem>>, vector<16x128xf32>
    tpu.vector_store %arg3[%c0_10, %c0_11], %60 {strides = array<i32>} : memref<16x128xf32, #tpu.memory_space<vmem>>, vector<16x128xf32>,
    return
  }
  func.func @transform_0(%arg0: i32) -> (i32, i32) {
    %c0_i32 = arith.constant 0 : i32
    %c0_i32_0 = arith.constant 0 : i32
    return %arg0, %c0_i32 : i32, i32
  }
  func.func @transform_1(%arg0: i32) -> (i32, i32) {
    %c0_i32 = arith.constant 0 : i32
    %c0_i32_0 = arith.constant 0 : i32
    %c0_i32_1 = arith.constant 0 : i32
    return %c0_i32, %c0_i32_0 : i32, i32
  }
  func.func @transform_2(%arg0: i32) -> (i32, i32) {
    %c0_i32 = arith.constant 0 : i32
    %c0_i32_0 = arith.constant 0 : i32
    return %arg0, %c0_i32 : i32, i32
  }
}

</mosaic_0001>

<llo_original>
// kernel: tpu_custom_call.1
$region0: #{tpu_custom_call.1}
  #allocation0 [shape = 'u32[]', space=smem, size = 0x4, offset = 0x4, fixed_abs, tag = 'smem constant byte address 0x4 - core index']
  #allocation1 [shape = 'u32[144,128]{1,0:T(1,128)}', space=vmem, size = 0x12000, scoped, tag = 'internal scratch']
  %s0 = inlined_call_operand.vmem [shape: f32[16,8], index: 0, kind: input, shape index: {}]
  %s1 = inlined_call_operand.hbm [shape: f32[40,128], index: 1, kind: input, shape index: {}]
  %s2 = inlined_call_operand.hbm [shape: f32[16,128], index: 2, kind: output, shape index: {}]
  %s3 = sld [smem:[#allocation0]]
  $region22: #{tpu_custom_call.1} parent=0
    _
  %s5 = ssub.s32 1, %s3
  %s6 = scalar_select 0, %s5, %s3
  $region1: #{tpu_custom_call.1} parent=0
    #allocation2 [shape = 'u8[20480]{0}', space=vmem, size = 0x5000, scoped, tag = 'input window, operand 1, single buffered']
    #allocation3 [shape = 's32[1]{0}', space=sflag, size = 0x4, scoped, tag = 'scoped memory for tpu_custom_call.1']
    #allocation4 [shape = 's32[1]{0}', space=sflag, size = 0x4, scoped, tag = 'scoped memory for tpu_custom_call.1']
    #allocation5 [shape = 'u8[8192]{0}', space=vmem, size = 0x2000, scoped, tag = 'output window, operand 0, single buffered']
    %7 = vsyncpa [#allocation3], 0
    %8 = vsyncpa [#allocation4], 0
    // Predicated region
    $region2: #{tpu_custom_call.1} parent=1 // pred_check
      _
    $region3: #{tpu_custom_call.1} parent=1 // pred_check_branch
      %10 = sbr.rel (0) target = $region5
    $region4: #{tpu_custom_call.1} parent=1 // pred_region
      _
    $region5: #{tpu_custom_call.1} parent=1 // pred_fallthru
      _
    // Predicated region
    $region6: #{tpu_custom_call.1} parent=1 // pred_check
      _
    $region7: #{tpu_custom_call.1} parent=1 // pred_check_branch
      %12 = sbr.rel (0) target = $region9
    $region8: #{tpu_custom_call.1} parent=1 // pred_region
      %s14 = ssub.s32 640, 640
      %15 = vsyncadd [#allocation3], %s14
      %s16 = sshll.u32 [#allocation2], 4
      %s17 = int_to_ptr.vmem [resolvable:$true] %s16
      %22 = dma.hbm_to_vmem [thread:$0]  %s1, 640, %s17, [#allocation3], 128, 128, 8
    $region9: #{tpu_custom_call.1} parent=1 // pred_fallthru
      _
    // Predicated region
    $region10: #{tpu_custom_call.1} parent=1 // pred_check
      _
    $region11: #{tpu_custom_call.1} parent=1 // pred_check_branch
      %24 = sbr.rel (0) target = $region13
    $region12: #{tpu_custom_call.1} parent=1 // pred_region
      %25 = dma.done [#allocation3], 640
    $region13: #{tpu_custom_call.1} parent=1 // pred_fallthru
      _
    %v26 = vld [vmem:[%s0] sm:$0xff]
    %v27 = vld [vmem:[%s0 + $0x8] sm:$0xff]
    %v28 = vcvt.f32.s32.to.zero.pseudo %v26
    %v29 = vcvt.f32.s32.to.zero.pseudo %v27
    %vm30 = vcmp.gt.s32.totalorder %v28, 0
    %v31 = vsel %vm30, %v28, 0
    %vm32 = vcmp.gt.s32.totalorder %v29, 0
    %v33 = vsel %vm32, %v29, 0
    %vm34 = vcmp.lt.s32.totalorder %v31, 2
    %v35 = vsel %vm34, %v31, 2
    %vm36 = vcmp.lt.s32.totalorder %v33, 2
    %v37 = vsel %vm36, %v33, 2
    %vm38 = vcmp.lt.s32.totalorder %v31, 9
    %v39 = vsel %vm38, %v31, 9
    %vm40 = vcmp.lt.s32.totalorder %v33, 9
    %v41 = vsel %vm40, %v33, 9
    %v42 = vadd.s32 %v39, 3
    %v43 = vadd.s32 %v41, 3
    %vm44 = vcmp.lt.s32.totalorder %v31, 19
    %v45 = vsel %vm44, %v31, 19
    %vm46 = vcmp.lt.s32.totalorder %v33, 19
    %v47 = vsel %vm46, %v33, 19
    %v48 = vadd.s32 %v45, 13
    %v49 = vadd.s32 %v47, 13
    %v50 = vlaneseq
    %v51 = vand.u32 %v50, 127
    %52 = vset.pattern.permute.xlu0 0
    %53 = vperm.xlu0 %52, %v35
    %v54 = vpop.permute.xlu0 %53
    %55 = vset.pattern.permute.xlu0 0
    %56 = vperm.xlu0 %55, %v37
    %v57 = vpop.permute.xlu0 %56
    %vm58 = vcmp.eq.s32.totalorder %v51, %v54
    %vm59 = vcmp.eq.s32.totalorder %v51, %v57
    %60 = vset.pattern.permute.xlu0 1
    %61 = vperm.xlu0 %60, %v42
    %v62 = vpop.permute.xlu0 %61
    %63 = vset.pattern.permute.xlu0 1
    %64 = vperm.xlu0 %63, %v43
    %v65 = vpop.permute.xlu0 %64
    %vm66 = vcmp.eq.s32.totalorder %v51, %v62
    %vm67 = vcmp.eq.s32.totalorder %v51, %v65
    %68 = vset.pattern.permute.xlu0 2
    %69 = vperm.xlu0 %68, %v48
    %v70 = vpop.permute.xlu0 %69
    %71 = vset.pattern.permute.xlu0 2
    %72 = vperm.xlu0 %71, %v49
    %v73 = vpop.permute.xlu0 %72
    %vm74 = vcmp.eq.s32.totalorder %v51, %v70
    %vm75 = vcmp.eq.s32.totalorder %v51, %v73
    %vm76 = vcmp.eq.s32.totalorder %v51, 33
    %vm77 = vcmp.eq.s32.totalorder %v51, 34
    %vm78 = vcmp.eq.s32.totalorder %v51, 35
    %vm79 = vcmp.eq.s32.totalorder %v51, 36
    %v80 = vsel %vm79, 1.0, 0.0
    %82 = vset.pattern.permute.xlu0 5
    %83 = vperm.xlu0 %82, %v26
    %v84 = vpop.permute.xlu0 %83
    %87 = vset.pattern.permute.xlu0 5
    %88 = vperm.xlu0 %87, %v27
    %v89 = vpop.permute.xlu0 %88
    %v91 = vsel %vm78, %v84, %v80
    %v92 = vsel %vm78, %v89, %v80
    %93 = vset.pattern.permute.xlu0 4
    %94 = vperm.xlu0 %93, %v26
    %v95 = vpop.permute.xlu0 %94
    %97 = vset.pattern.permute.xlu0 4
    %98 = vperm.xlu0 %97, %v27
    %v99 = vpop.permute.xlu0 %98
    %v101 = vsel %vm77, %v95, %v91
    %v102 = vsel %vm77, %v99, %v92
    %103 = vset.pattern.permute.xlu0 3
    %104 = vperm.xlu0 %103, %v26
    %v105 = vpop.permute.xlu0 %104
    %107 = vset.pattern.permute.xlu0 3
    %108 = vperm.xlu0 %107, %v27
    %v109 = vpop.permute.xlu0 %108
    %v111 = vsel %vm76, %v105, %v101
    %v112 = vsel %vm76, %v109, %v102
    %v113 = vsel %vm74, 1.0, %v111
    %v114 = vsel %vm75, 1.0, %v112
    %v115 = vsel %vm66, 1.0, %v113
    %v116 = vsel %vm67, 1.0, %v114
    %v117 = vsel %vm58, 1.0, %v115
    %v118 = vsel %vm59, 1.0, %v116
    %v119 = vld [vmem:[#allocation2] sm:$0xff]
    %v120 = vld [vmem:[#allocation2 + $0x8] sm:$0xff]
    %v121 = vld [vmem:[#allocation2 + $0x10] sm:$0xff]
    %v122 = vld [vmem:[#allocation2 + $0x18] sm:$0xff]
    %v123 = vld [vmem:[#allocation2 + $0x20] sm:$0xff]
    %vm124 = vcmask 326656
    %v126 = vsel %vm124, %v117, 0
    %v129 = vsel %vm124, %v118, 0
    %131 = vmatprep.subr.mxu0 0.0
    %132 = vmatpush1.msra.mxu0 %v119
    %133 = vmatprep.subr.mxu0 0.0
    %134 = vmatpush1.msra.mxu0 %v120
    %135 = vmatprep.subr.mxu0 0.0
    %136 = vmatpush1.msra.mxu0 %v121
    %137 = vmatprep.subr.mxu0 0.0
    %138 = vmatpush1.msra.mxu0 %v122
    %139 = vmatprep.subr.mxu0 0.0
    %140 = vmatpush1.msra.mxu0 %v123
    %141 = vmatprep.subr.mxu0 0.0
    %142 = vmatpush1.msra.mxu0 0.0
    %143 = vmatprep.subr.mxu0 0.0
    %144 = vmatpush1.msra.mxu0 0.0
    %145 = vmatprep.subr.mxu0 0.0
    %146 = vmatpush1.msra.mxu0 0.0
    %147 = vmatprep.subr.mxu0 0.0
    %148 = vmatpush1.msra.mxu0 0.0
    %149 = vmatprep.subr.mxu0 0.0
    %150 = vmatpush1.msra.mxu0 0.0
    %151 = vmatprep.subr.mxu0 0.0
    %152 = vmatpush1.msra.mxu0 0.0
    %153 = vmatprep.subr.mxu0 0.0
    %154 = vmatpush1.msra.mxu0 0.0
    %155 = vmatprep.subr.mxu0 0.0
    %156 = vmatpush1.msra.mxu0 0.0
    %157 = vmatprep.subr.mxu0 0.0
    %158 = vmatpush1.msra.mxu0 0.0
    %159 = vmatprep.subr.mxu0 0.0
    %160 = vmatpush1.msra.mxu0 0.0
    %161 = vmatprep.subr.mxu0 0.0
    %162 = vmatpush1.msra.mxu0 0.0
    %163 = vmatprep.subr.mxu0 0.0
    %164 = vmatpush1.msra.mxu0 0.0
    %165 = vmatprep.subr.mxu0 0.0
    %166 = vmatpush1.msra.mxu0 0.0
    %167 = vmatprep.subr.mxu0 0.0
    %168 = vmatpush1.msra.mxu0 0.0
    %169 = vmatprep.subr.mxu0 0.0
    %170 = vmatpush1.msra.mxu0 0.0
    %171 = vmatprep.subr.mxu0 0.0
    %172 = vmatpush1.msra.mxu0 0.0
    %173 = vmatprep.subr.mxu0 0.0
    %174 = vmatpush1.msra.mxu0 0.0
    %175 = vmatprep.subr.mxu0 0.0
    %176 = vmatpush1.msra.mxu0 0.0
    %177 = vmatprep.subr.mxu0 0.0
    %178 = vmatpush1.msra.mxu0 0.0
    %179 = vmatprep.subr.mxu0 0.0
    %180 = vmatpush1.msra.mxu0 0.0
    %181 = vmatprep.subr.mxu0 0.0
    %182 = vmatpush1.msra.mxu0 0.0
    %183 = vmatprep.subr.mxu0 0.0
    %184 = vmatpush1.msra.mxu0 0.0
    %185 = vmatprep.subr.mxu0 0.0
    %186 = vmatpush1.msra.mxu0 0.0
    %187 = vmatprep.subr.mxu0 0.0
    %188 = vmatpush1.msra.mxu0 0.0
    %189 = vmatprep.subr.mxu0 0.0
    %190 = vmatpush1.msra.mxu0 0.0
    %191 = vmatprep.subr.mxu0 0.0
    %192 = vmatpush1.msra.mxu0 0.0
    %193 = vmatprep.subr.mxu0 0.0
    %194 = vmatpush1.msra.mxu0 0.0
    %195 = vmatprep.mubr.f32.mxu0 0.0
    %196 = vmatmul.mubr.f32.gmra.mrb[0].mxu0 %v126
    %v197 = vpop.f32.mrb[0].mxu0
    %v198 = vadd.f32 0.0, %v197
    %v199 = vpop.f32.mrb[0].mxu0
    %200 = vmatprep.mubr.f32.mxu0 0.0
    %201 = vmatmul.mubr.f32.gmra.mrb[0].mxu0 %v129
    %v202 = vpop.f32.mrb[0].mxu0
    %v203 = vadd.f32 0.0, %v202
    %v204 = vpop.f32.mrb[0].mxu0
    %205 = vdwg.mxu0
    %206 = vst [vmem:[#allocation5] sm:$0xff] %v198
    %207 = vst [vmem:[#allocation5 + $0x8] sm:$0xff] %v203
    // Predicated region
    $region14: #{tpu_custom_call.1} parent=1 // pred_check
      _
    $region15: #{tpu_custom_call.1} parent=1 // pred_check_branch
      %209 = sbr.rel (0) target = $region17
    $region16: #{tpu_custom_call.1} parent=1 // pred_region
      %s211 = ssub.s32 256, 256
      %212 = vsyncadd [#allocation4], %s211
      %s213 = sshll.u32 [#allocation5], 4
      %s214 = int_to_ptr.vmem [resolvable:$true] %s213
      %219 = dma.vmem_to_hbm [thread:$0]  %s214, 256, %s2, [#allocation4], 128, 128, 8
    $region17: #{tpu_custom_call.1} parent=1 // pred_fallthru
      _
    // Predicated region
    $region18: #{tpu_custom_call.1} parent=1 // pred_check
      _
    $region19: #{tpu_custom_call.1} parent=1 // pred_check_branch
      %221 = sbr.rel (0) target = $region21
    $region20: #{tpu_custom_call.1} parent=1 // pred_region
      %222 = dma.done [#allocation4], 256
    $region21: #{tpu_custom_call.1} parent=1 // pred_fallthru
      _
    %223 = vsyncpa [#allocation3], 1
    %224 = vsyncpa [#allocation4], 1

</llo_original>
